<compile_context>
chip_gen: v7x
topology: tpu7x:2x2x1
jax: 0.10.0
libtpu: 0.0.40
codegen_flags: <defaults>
</compile_context>

<pallas_src>
import jax
import jax.numpy as jnp
from jax.experimental import pallas as pl
from jax.experimental.pallas import tpu as pltpu


def _round_up(x, m):
    return ((x + m - 1) // m) * m


def _matmul_bias_kernel(p_ref, w_ref, b_ref, o_ref):
    # p_ref: (tile_m, K) bf16   w_ref: (K, dim_out) bf16
    # b_ref: (1, dim_out) f32   o_ref: (tile_m, dim_out) out dtype
    acc = jnp.dot(p_ref[...], w_ref[...], preferred_element_type=jnp.float32)
    o_ref[...] = (acc + b_ref[...]).astype(o_ref.dtype)


def _resize_mask_nearest(mask, target_hw):
    # Mirrors F.interpolate(mask.float(), size=target_size) (default 'nearest').
    H, W = target_hw
    mh, mw = int(mask.shape[-2]), int(mask.shape[-1])
    if (mh, mw) == (int(H), int(W)):
        return mask
    ri = jnp.floor(jnp.arange(H) * (mh / H)).astype(jnp.int32)
    ci = jnp.floor(jnp.arange(W) * (mw / W)).astype(jnp.int32)
    return mask[..., ri[:, None], ci[None, :]]


def patch_embed_forward(x, weight, bias, kernel, stride, padding, mask=None,
                        *, tile_m=2048, out_dtype=None):
    """Equivalent of PatchEmbed.forward.

    x:      (B, C_in, H, W)
    weight: (dim_out, C_in, kh, kw)
    bias:   (dim_out,)
    returns (B, H_out*W_out, dim_out)

    out_dtype defaults to x.dtype; pass jnp.bfloat16 to halve output HBM
    writes if the downstream Hiera stage tolerates it.
    """
    B, C_in, H, W = x.shape
    kh, kw = kernel
    sh, sw = stride
    ph, pw = padding
    dim_out = weight.shape[0]
    out_dtype = x.dtype if out_dtype is None else out_dtype

    if mask is not None:
        # PyTorch: x * mask.to(torch.bool)  -> multiply by binarized mask.
        mask = _resize_mask_nearest(mask.astype(jnp.float32), (H, W))
        x = x * (mask != 0).astype(x.dtype)

    H_out = (H + 2 * ph - kh) // sh + 1
    W_out = (W + 2 * pw - kw) // sw + 1
    M = B * H_out * W_out
    K = kh * kw * C_in

    # --- im2col glue (plain JAX), bf16 end-to-end, channels-last so the
    # reshape to (M, K) is layout-preserving (no transpose of the expanded
    # tensor and no f32 intermediate ever materializes in HBM).
    x_nhwc = jnp.transpose(x.astype(jnp.bfloat16), (0, 2, 3, 1))      # (B,H,W,C)
    xp = jnp.pad(x_nhwc, ((0, 0), (ph, ph), (pw, pw), (0, 0)))

    r_idx = (jnp.arange(H_out) * sh)[:, None] + jnp.arange(kh)[None, :]   # (H_out, kh)
    c_idx = (jnp.arange(W_out) * sw)[:, None] + jnp.arange(kw)[None, :]   # (W_out, kw)
    # advanced indexing -> (B, H_out, W_out, kh, kw, C_in), already in K-order.
    patches = xp[:, r_idx[:, None, :, None], c_idx[None, :, None, :], :]
    patches = patches.reshape(M, K)                                       # bf16

    # Weight flattened in matching (kh, kw, C_in) K-order; bias kept f32.
    w_flat = jnp.transpose(weight, (2, 3, 1, 0)).reshape(K, dim_out).astype(jnp.bfloat16)
    b_row = bias.reshape(1, dim_out).astype(jnp.float32)

    # --- tile_m selection
    tile_m = max(16, (int(tile_m) // 16) * 16)          # bf16 sublane packing
    # keep >= 2 grid blocks when M allows so v7x megacore gets both TCs busy
    tile_m = min(tile_m, _round_up(pl.cdiv(M, 2), 16))
    # conservative per-step VMEM budget (double-buffered patches + output),
    # sized for v5e's 16 MiB default scoped VMEM
    k_lanes = _round_up(K, 128)
    n_lanes = _round_up(dim_out, 128)
    bytes_per_row = 2 * (k_lanes * 2) + 2 * (n_lanes * jnp.dtype(out_dtype).itemsize)
    vmem_budget = 10 * 1024 * 1024
    tile_m = min(tile_m, max(16, (vmem_budget // bytes_per_row // 16) * 16))
    grid_m = pl.cdiv(M, tile_m)

    cost = pl.CostEstimate(
        flops=2 * M * K * dim_out,
        transcendentals=0,
        bytes_accessed=(M * K * 2 + K * dim_out * 2 + dim_out * 4
                        + M * dim_out * jnp.dtype(out_dtype).itemsize),
    )

    # --- Pallas GEMM + bias (hot path).  K is small (~150-200): single block,
    # no k-axis / accumulator needed.  Weight & bias index_maps are constant
    # so they stay VMEM-resident across grid steps; patches/output are
    # double-buffered.  Ragged last M block: OOB reads are padded, OOB stores
    # are masked.
    # TODO(synk): if profiling still shows exposed DMA at large tile_m, add
    # pipeline_mode=pl.Buffered(3) on the patches BlockSpec.
    out_flat = pl.pallas_call(
        _matmul_bias_kernel,
        out_shape=jax.ShapeDtypeStruct((M, dim_out), out_dtype),
        grid=(grid_m,),
        in_specs=[
            pl.BlockSpec((tile_m, K), lambda i: (i, 0)),
            pl.BlockSpec((K, dim_out), lambda i: (0, 0)),
            pl.BlockSpec((1, dim_out), lambda i: (0, 0)),
        ],
        out_specs=pl.BlockSpec((tile_m, dim_out), lambda i: (i, 0)),
        compiler_params=pltpu.CompilerParams(
            dimension_semantics=("parallel",),
        ),
        cost_estimate=cost,
    )(patches, w_flat, b_row)

    # (M, dim_out) -> (B, H_out*W_out, dim_out): metadata-only reshape.
    return out_flat.reshape(B, H_out * W_out, dim_out)


def _reference_forward(x, weight, bias, stride, padding):
    """Pure-JAX reference (lax conv) for correctness checking."""
    y = jax.lax.conv_general_dilated(
        x, weight,
        window_strides=stride,
        padding=[(padding[0], padding[0]), (padding[1], padding[1])],
        dimension_numbers=("NCHW", "OIHW", "NCHW"),
    ) + bias[None, :, None, None]
    B, C, Ho, Wo = y.shape
    return jnp.transpose(y.reshape(B, C, Ho * Wo), (0, 2, 1))


if __name__ == "__main__":
    # Small shapes consistent with Hiera's PatchEmbed (kernel 7, stride 4, pad 3)
    B, C_in, H, W = 2, 4, 16, 16
    dim_out = 32
    kernel = (7, 7)
    stride = (4, 4)
    padding = (3, 3)

    key = jax.random.PRNGKey(0)
    kx, kw_, kb = jax.random.split(key, 3)

    x = jax.random.normal(kx, (B, C_in, H, W), dtype=jnp.float32)

    # Deterministic parameter init (PyTorch-style uniform bounds)
    fan_in = C_in * kernel[0] * kernel[1]
    bound = 1.0 / (fan_in ** 0.5)
    weight = jax.random.uniform(
        kw_, (dim_out, C_in, kernel[0], kernel[1]),
        minval=-bound, maxval=bound, dtype=jnp.float32)
    bias = jax.random.uniform(
        kb, (dim_out,), minval=-bound, maxval=bound, dtype=jnp.float32)

    out = patch_embed_forward(x, weight, bias, kernel, stride, padding)
    out = jax.block_until_ready(out)

    ref = _reference_forward(x, weight, bias, stride, padding)
    assert out.shape == ref.shape, (out.shape, ref.shape)
    # bf16 streaming operands with f32 accumulation -> loosen tolerance vs f32 conv.
    assert jnp.allclose(out, ref, atol=2e-2, rtol=2e-2), "mismatch vs reference conv"

    print("KERNEL_OK")
</pallas_src>

<mosaic_0001>
module attributes {stable_mosaic.version = 11 : i64} {
  func.func @_matmul_bias_kernel(%arg0: i32, %arg1: memref<16x196xbf16, #tpu.memory_space<vmem>>, %arg2: memref<196x32xbf16, #tpu.memory_space<vmem>>, %arg3: memref<1x32xf32, #tpu.memory_space<vmem>>, %arg4: memref<16x32xf32, #tpu.memory_space<vmem>>) attributes {dimension_semantics = [#tpu.dimension_semantics<parallel>], iteration_bounds = array<i64: 2>, scalar_prefetch = 0 : i64, scratch_operands = 0 : i64, tpu.core_type = #tpu.core_type<tc>, window_params = [{transform_indices = @transform_0, window_bounds = array<i64: 16, 196>}, {pipeline_mode = #tpu.pipeline_mode<synchronous>, transform_indices = @transform_1, window_bounds = array<i64: 196, 32>}, {pipeline_mode = #tpu.pipeline_mode<synchronous>, transform_indices = @transform_2, window_bounds = array<i64: 1, 32>}, {transform_indices = @transform_3, window_bounds = array<i64: 16, 32>}]} {
    %c0 = arith.constant 0 : index
    %c0_0 = arith.constant 0 : index
    %0 = vector.load %arg1[%c0, %c0_0] : memref<16x196xbf16, #tpu.memory_space<vmem>>, vector<16x196xbf16>
    %c0_1 = arith.constant 0 : index
    %c0_2 = arith.constant 0 : index
    %1 = vector.load %arg2[%c0_1, %c0_2] : memref<196x32xbf16, #tpu.memory_space<vmem>>, vector<196x32xbf16>
    %cst = arith.constant dense<0.000000e+00> : vector<16x32xf32>
    %2 = tpu.matmul %0, %1, %cst {dimension_numbers = #tpu.dot_dimension_numbers<[1], [0], [0], [1], [0, 0, 1, 1], [], []>} : vector<16x196xbf16>, vector<196x32xbf16>, vector<16x32xf32> -> vector<16x32xf32>
    %c0_3 = arith.constant 0 : index
    %c0_4 = arith.constant 0 : index
    %3 = vector.load %arg3[%c0_3, %c0_4] : memref<1x32xf32, #tpu.memory_space<vmem>>, vector<1x32xf32>
    %4 = vector.broadcast %3 : vector<1x32xf32> to vector<16x32xf32>
    %5 = arith.addf %2, %4 : vector<16x32xf32>
    %c0_5 = arith.constant 0 : index
    %c0_6 = arith.constant 0 : index
    %6 = vector.load %arg4[%c0_5, %c0_6] : memref<16x32xf32, #tpu.memory_space<vmem>>, vector<16x32xf32>
    tpu.vector_store %arg4[%c0_5, %c0_6], %5 {strides = array<i32>} : memref<16x32xf32, #tpu.memory_space<vmem>>, vector<16x32xf32>,
    return
  }
  func.func @transform_0(%arg0: i32) -> (i32, i32) {
    %c0_i32 = arith.constant 0 : i32
    %c0_i32_0 = arith.constant 0 : i32
    return %arg0, %c0_i32 : i32, i32
  }
  func.func @transform_1(%arg0: i32) -> (i32, i32) {
    %c0_i32 = arith.constant 0 : i32
    %c0_i32_0 = arith.constant 0 : i32
    %c0_i32_1 = arith.constant 0 : i32
    return %c0_i32, %c0_i32_0 : i32, i32
  }
  func.func @transform_2(%arg0: i32) -> (i32, i32) {
    %c0_i32 = arith.constant 0 : i32
    %c0_i32_0 = arith.constant 0 : i32
    %c0_i32_1 = arith.constant 0 : i32
    return %c0_i32, %c0_i32_0 : i32, i32
  }
  func.func @transform_3(%arg0: i32) -> (i32, i32) {
    %c0_i32 = arith.constant 0 : i32
    %c0_i32_0 = arith.constant 0 : i32
    return %arg0, %c0_i32 : i32, i32
  }
}

</mosaic_0001>

<llo_original>
// kernel: tpu_custom_call.1
$region0: #{tpu_custom_call.1}
  #allocation0 [shape = 'u32[]', space=smem, size = 0x4, offset = 0x4, fixed_abs, tag = 'smem constant byte address 0x4 - core index']
  #allocation1 [shape = 'u32[144,128]{1,0:T(1,128)}', space=vmem, size = 0x12000, scoped, tag = 'internal scratch']
  %s0 = inlined_call_operand.vmem [shape: bf16[32,196], index: 0, kind: input, shape index: {}]
  %s1 = inlined_call_operand.vmem [shape: bf16[196,32], index: 1, kind: input, shape index: {}]
  %s2 = inlined_call_operand.vmem [shape: f32[1,32], index: 2, kind: input, shape index: {}]
  %s3 = inlined_call_operand.hbm [shape: f32[32,32], index: 3, kind: output, shape index: {}]
  %s4 = sld [smem:[#allocation0]]
  $region45: #{tpu_custom_call.1} parent=0
    _
  %s6 = ssub.s32 1, %s4
  %s7 = scalar_select 0, %s6, %s4
  $region1: #{tpu_custom_call.1} parent=0
    #allocation2 [shape = 'u8[16384]{0}', space=vmem, size = 0x4000, scoped, tag = 'output window, operand 0']
    #allocation3 [shape = 's32[2]{0}', space=sflag, size = 0x8, scoped, tag = 'scoped memory for tpu_custom_call.1']
    %8 = vsyncpa [#allocation3], 0
    %s9 = scalar_lea.sflag [#allocation3], 1
    %10 = vsyncpa %s9, 0
    loop: start=0, step=1, limit=4
    $region2: #{tpu_custom_call.1} parent=1 // loop_pre_header
      _
    $region3: #{tpu_custom_call.1} parent=1 // loop_header
      %s12 = sphi 0, %s16
      %p13 = scmp.ge.s32.totalorder %s12, 4
      %s22 = sphi 0, %s24
      %s25 = sphi 0, %s22
      %s26 = sphi 0, %s25
      %s42 = sphi 0, %s26
      %s46 = sphi 0, %s46
      %s48 = sphi 0, %s46
      %s49 = sphi 0, %s48
      %s63 = sphi 0, %s49
      %s67 = sphi 0, %s67
      %s69 = sphi 0, %s67
      %s70 = sphi 0, %s69
      %s84 = sphi 0, %s70
      %s90 = sphi 0, %s92
      %s93 = sphi 0, %s90
      %s94 = sphi 0, %s93
      %s110 = sphi 0, %s94
    $region4: #{tpu_custom_call.1} parent=1 // loop_header_branch
      %15 = sbr.rel (%p13) target = $region8
    $region5: #{tpu_custom_call.1} parent=1 // loop_body
      %s17 = ssub.s32 %s12, 1
      %s18 = ssub.s32 %s12, 2
      %s19 = sadd.s32 %s12, 1
      %s20 = ssub.s32 %s12, %s19
      %p21 = scmp.eq.s32.totalorder %s20, 0
      %s23 = sadd.s32 %s22, 1
      %s24 = scalar_select %p21, %s22, %s23
      %p27 = pneg %p21
      %p28 = scmp.eq.s32.totalorder %s12, 1
      %p29 = por %p27, %p28
      %p30 = scmp.ne.s32.totalorder %s22, %s25
      %p31 = scmp.eq.s32.totalorder %s12, 0
      %p32 = por %p30, %p31
      %p33 = scmp.ne.s32.totalorder %s22, %s25
      %p34 = scmp.eq.s32.totalorder %s17, 1
      %p35 = por %p33, %p34
      %p36 = scmp.ne.s32.totalorder %s25, %s26
      %p37 = scmp.eq.s32.totalorder %s17, 0
      %p38 = por %p36, %p37
      %p39 = scmp.ne.s32.totalorder %s25, %s26
      %p40 = scmp.eq.s32.totalorder %s18, 1
      %p41 = por %p39, %p40
      %p43 = scmp.ne.s32.totalorder %s26, %s42
      %p44 = scmp.eq.s32.totalorder %s18, 0
      %p45 = por %p43, %p44
      %s47 = sadd.s32 %s46, 1
      %p50 = scmp.eq.s32.totalorder %s12, 1
      %p51 = scmp.ne.s32.totalorder %s46, %s48
      %p52 = scmp.eq.s32.totalorder %s12, 0
      %p53 = por %p51, %p52
      %p54 = scmp.ne.s32.totalorder %s46, %s48
      %p55 = scmp.eq.s32.totalorder %s17, 1
      %p56 = por %p54, %p55
      %p57 = scmp.ne.s32.totalorder %s48, %s49
      %p58 = scmp.eq.s32.totalorder %s17, 0
      %p59 = por %p57, %p58
      %p60 = scmp.ne.s32.totalorder %s48, %s49
      %p61 = scmp.eq.s32.totalorder %s18, 1
      %p62 = por %p60, %p61
      %p64 = scmp.ne.s32.totalorder %s49, %s63
      %p65 = scmp.eq.s32.totalorder %s18, 0
      %p66 = por %p64, %p65
      %s68 = sadd.s32 %s67, 1
      %p71 = scmp.eq.s32.totalorder %s12, 1
      %p72 = scmp.ne.s32.totalorder %s67, %s69
      %p73 = scmp.eq.s32.totalorder %s12, 0
      %p74 = por %p72, %p73
      %p75 = scmp.ne.s32.totalorder %s67, %s69
      %p76 = scmp.eq.s32.totalorder %s17, 1
      %p77 = por %p75, %p76
      %p78 = scmp.ne.s32.totalorder %s69, %s70
      %p79 = scmp.eq.s32.totalorder %s17, 0
      %p80 = por %p78, %p79
      %p81 = scmp.ne.s32.totalorder %s69, %s70
      %p82 = scmp.eq.s32.totalorder %s18, 1
      %p83 = por %p81, %p82
      %p85 = scmp.ne.s32.totalorder %s70, %s84
      %p86 = scmp.eq.s32.totalorder %s18, 0
      %p87 = por %p85, %p86
      %s88 = ssub.s32 %s12, %s19
      %p89 = scmp.eq.s32.totalorder %s88, 0
      %s91 = sadd.s32 %s90, 1
      %s92 = scalar_select %p89, %s90, %s91
      %p95 = pneg %p89
      %p96 = scmp.eq.s32.totalorder %s12, 1
      %p97 = por %p95, %p96
      %p98 = scmp.ne.s32.totalorder %s90, %s93
      %p99 = scmp.eq.s32.totalorder %s12, 0
      %p100 = por %p98, %p99
      %p101 = scmp.ne.s32.totalorder %s90, %s93
      %p102 = scmp.eq.s32.totalorder %s17, 1
      %p103 = por %p101, %p102
      %p104 = scmp.ne.s32.totalorder %s93, %s94
      %p105 = scmp.eq.s32.totalorder %s17, 0
      %p106 = por %p104, %p105
      %p107 = scmp.ne.s32.totalorder %s93, %s94
      %p108 = scmp.eq.s32.totalorder %s18, 1
      %p109 = por %p107, %p108
      %p111 = scmp.ne.s32.totalorder %s94, %s110
      %p112 = scmp.eq.s32.totalorder %s18, 0
      %p113 = por %p111, %p112
      %p114 = scmp.le.s32.totalorder 1, %s12
      %p115 = scmp.lt.s32.totalorder %s12, 3
      %p116 = pnand %p114, %p115
      %p117 = pneg %p116
      // Predicated region
      $region9: #{tpu_custom_call.1} parent=5 // pred_check
        _
      $region10: #{tpu_custom_call.1} parent=5 // pred_check_branch
        %119 = sbr.rel (%p116) target = $region12
      $region11: #{tpu_custom_call.1} parent=5 // pred_region
        %s120 = ssub.s32 %s12, 1
        // Predicated region
        $region13: #{tpu_custom_call.1} parent=11 // pred_check
          %p121 = pneg %p59
        $region14: #{tpu_custom_call.1} parent=11 // pred_check_branch
          %123 = sbr.rel (%p121) target = $region16
        $region15: #{tpu_custom_call.1} parent=11 // pred_region
          _
        $region16: #{tpu_custom_call.1} parent=11 // pred_fallthru
          _
        // Predicated region
        $region17: #{tpu_custom_call.1} parent=11 // pred_check
          %p124 = pneg %p80
        $region18: #{tpu_custom_call.1} parent=11 // pred_check_branch
          %126 = sbr.rel (%p124) target = $region20
        $region19: #{tpu_custom_call.1} parent=11 // pred_region
          _
        $region20: #{tpu_custom_call.1} parent=11 // pred_fallthru
          _
      $region12: #{tpu_custom_call.1} parent=5 // pred_fallthru
        _
      %p127 = scmp.lt.s32.totalorder %s12, 2
      // Predicated region
      $region21: #{tpu_custom_call.1} parent=5 // pred_check
        %p128 = pneg %p127
      $region22: #{tpu_custom_call.1} parent=5 // pred_check_branch
        %130 = sbr.rel (%p128) target = $region24
      $region23: #{tpu_custom_call.1} parent=5 // pred_region
        // Predicated region
        $region25: #{tpu_custom_call.1} parent=23 // pred_check
          %p131 = pneg %p32
        $region26: #{tpu_custom_call.1} parent=23 // pred_check_branch
          %133 = sbr.rel (%p131) target = $region28
        $region27: #{tpu_custom_call.1} parent=23 // pred_region
          %s134 = smul.u32 2, %s12
          %p135 = scmp.lt.s32.totalorder %s134, 3
          %s136 = scalar_select %p135, %s134, 3
          %s137 = smul.addr %s136, 2
          %s138 = smul.addr %s137, 4
          %s139 = scalar_lea.vmem %s0, %s138
          %s140 = smul.u32 2, %s12
        $region28: #{tpu_custom_call.1} parent=23 // pred_fallthru
          _
      $region24: #{tpu_custom_call.1} parent=5 // pred_fallthru
        _
      %p141 = scmp.le.s32.totalorder 1, %s12
      %p142 = scmp.lt.s32.totalorder %s12, 3
      %p143 = pnand %p141, %p142
      %p144 = pneg %p143
      // Predicated region
      $region29: #{tpu_custom_call.1} parent=5 // pred_check
        _
      $region30: #{tpu_custom_call.1} parent=5 // pred_check_branch
        %146 = sbr.rel (%p143) target = $region32
      $region31: #{tpu_custom_call.1} parent=5 // pred_region
        %s147 = ssub.s32 %s12, 1
        %s148 = smul.u32 2, %s17
        %p149 = scmp.lt.s32.totalorder %s148, 3
        %s150 = scalar_select %p149, %s148, 3
        %s151 = smul.addr %s150, 2
        %s152 = smul.addr %s151, 4
        %s153 = scalar_lea.vmem %s0, %s152
        %p154 = pneg %p38
        %p155 = pneg %p35
        %p156 = pneg %p59
        %p157 = pneg %p56
        %p158 = pneg %p80
        %p159 = pneg %p77
        %p160 = pneg %p106
        %p161 = pneg %p103
        %s162 = sand.u32 %s93, 1
        %s163 = scalar_lea.sflag [#allocation3], %s162
        %s164 = sand.u32 %s93, 1
        %s165 = smul.addr %s164, 16
        %s166 = scalar_lea.vmem [#allocation2], %s165
        %s167 = smul.u32 2, %s17
        %p168 = scmp.lt.s32.totalorder %s167, 3
        %s169 = scalar_select %p168, %s167, 3
        %s170 = smul.addr %s169, 2
        %s171 = smul.addr %s170, 4
        %s172 = scalar_lea.vmem %s0, %s171
        %s173 = smul.u32 2, %s17
        %s174 = smul.u32 2, %s17
        %v176 = vld [vmem:[%s172] sm:$0xff]
        %v177 = vld [vmem:[%s172 + $0x8] sm:$0xff]
        %v178 = vld [vmem:[%s1] sm:$0xf]
        %v179 = vld [vmem:[%s1 + $0x4] sm:$0xf]
        %v180 = vld [vmem:[%s1 + $0x8] sm:$0xf]
        %v181 = vld [vmem:[%s1 + $0xc] sm:$0xf]
        %v182 = vld [vmem:[%s1 + $0x10] sm:$0xf]
        %v183 = vld [vmem:[%s1 + $0x14] sm:$0xf]
        %v184 = vld [vmem:[%s1 + $0x18] sm:$0xf]
        %v185 = vld [vmem:[%s1 + $0x1c] sm:$0xf]
        %v186 = vld [vmem:[%s1 + $0x20] sm:$0xf]
        %v187 = vld [vmem:[%s1 + $0x24] sm:$0xf]
        %v188 = vld [vmem:[%s1 + $0x28] sm:$0xf]
        %v189 = vld [vmem:[%s1 + $0x2c] sm:$0xf]
        %v190 = vld [vmem:[%s1 + $0x30] sm:$0xf]
        %v191 = vld [vmem:[%s1 + $0x34] sm:$0xf]
        %v192 = vld [vmem:[%s1 + $0x38] sm:$0xf]
        %v193 = vld [vmem:[%s1 + $0x3c] sm:$0xf]
        %v194 = vld [vmem:[%s1 + $0x40] sm:$0xf]
        %v195 = vld [vmem:[%s1 + $0x44] sm:$0xf]
        %v196 = vld [vmem:[%s1 + $0x48] sm:$0xf]
        %v197 = vld [vmem:[%s1 + $0x4c] sm:$0xf]
        %v198 = vld [vmem:[%s1 + $0x50] sm:$0xf]
        %v199 = vld [vmem:[%s1 + $0x54] sm:$0xf]
        %v200 = vld [vmem:[%s1 + $0x58] sm:$0xf]
        %v201 = vld [vmem:[%s1 + $0x5c] sm:$0xf]
        %v202 = vld [vmem:[%s1 + $0x60] sm:$0x3]
        %v203 = vld [vmem:[%s2] sm:$0x1]
        %v205 = vlaneseq
        %v206 = vshrl.u32 %v205, 7
        %v207 = vsub.s32 0, %v206
        %v208 = vrot.slane %v203, %v207
        %v212 = vunpack.c.l.b16 %v176
        %v213 = vunpack.c.h.b16 %v176
        %v214 = vunpack.c.l.b16 %v177
        %v215 = vunpack.c.h.b16 %v177
        %v216 = vpack.c.b16 %v214, %v212
        %v217 = vpack.c.b16 %v215, %v213
        %v244 = vunpack.c.l.b16 %v178
        %v245 = vunpack.c.l.b16 %v179
        %v246 = vunpack.c.l.b16 %v180
        %v247 = vunpack.c.l.b16 %v181
        %v248 = vunpack.c.l.b16 %v182
        %v249 = vunpack.c.l.b16 %v183
        %v250 = vunpack.c.l.b16 %v184
        %v251 = vunpack.c.l.b16 %v185
        %v252 = vunpack.c.l.b16 %v186
        %v253 = vunpack.c.l.b16 %v187
        %v254 = vunpack.c.l.b16 %v188
        %v255 = vunpack.c.l.b16 %v189
        %v256 = vunpack.c.l.b16 %v190
        %v257 = vunpack.c.l.b16 %v191
        %v258 = vunpack.c.l.b16 %v192
        %v259 = vunpack.c.l.b16 %v193
        %v260 = vunpack.c.l.b16 %v194
        %v261 = vunpack.c.l.b16 %v195
        %v262 = vunpack.c.l.b16 %v196
        %v263 = vunpack.c.l.b16 %v197
        %v264 = vunpack.c.l.b16 %v198
        %v265 = vunpack.c.l.b16 %v199
        %v266 = vunpack.c.l.b16 %v200
        %v267 = vunpack.c.l.b16 %v201
        %v268 = vunpack.c.l.b16 %v202
        %v269 = vpack.c.b16 %v245, %v244
        %v270 = vpack.c.b16 %v247, %v246
        %v271 = vpack.c.b16 %v249, %v248
        %v272 = vpack.c.b16 %v251, %v250
        %v273 = vpack.c.b16 %v253, %v252
        %v274 = vpack.c.b16 %v255, %v254
        %v275 = vpack.c.b16 %v257, %v256
        %v276 = vpack.c.b16 %v259, %v258
        %v277 = vpack.c.b16 %v261, %v260
        %v278 = vpack.c.b16 %v263, %v262
        %v279 = vpack.c.b16 %v265, %v264
        %v280 = vpack.c.b16 %v267, %v266
        %v281 = vpack.c.b16 %v268, %v268
        %vm294 = vcmask 556032
        %v296 = vsel %vm294, %v217, 0
        %vm298 = vcmask 1041408
        %v300 = vsel %vm298, %v281, 0
        %302 = vmatprep.subr.bf16.mxu0 0
        %303 = vmatpush1.bf16.msra.mxu0 %v269
        %304 = vmatprep.subr.bf16.mxu0 0
        %305 = vmatpush1.bf16.msra.mxu0 %v270
        %306 = vmatprep.subr.bf16.mxu0 0
        %307 = vmatpush1.bf16.msra.mxu0 %v271
        %308 = vmatprep.subr.bf16.mxu0 0
        %309 = vmatpush1.bf16.msra.mxu0 %v272
        %310 = vmatprep.subr.bf16.mxu0 0
        %311 = vmatpush1.bf16.msra.mxu0 %v273
        %312 = vmatprep.subr.bf16.mxu0 0
        %313 = vmatpush1.bf16.msra.mxu0 %v274
        %314 = vmatprep.subr.bf16.mxu0 0
        %315 = vmatpush1.bf16.msra.mxu0 %v275
        %316 = vmatprep.subr.bf16.mxu0 0
        %317 = vmatpush1.bf16.msra.mxu0 %v276
        %318 = vmatprep.subr.bf16.mxu0 0
        %319 = vmatpush1.bf16.msra.mxu0 %v277
        %320 = vmatprep.subr.bf16.mxu0 0
        %321 = vmatpush1.bf16.msra.mxu0 %v278
        %322 = vmatprep.subr.bf16.mxu0 0
        %323 = vmatpush1.bf16.msra.mxu0 %v279
        %324 = vmatprep.subr.bf16.mxu0 0
        %325 = vmatpush1.bf16.msra.mxu0 %v280
        %326 = vmatprep.subr.bf16.mxu0 0
        %327 = vmatpush1.bf16.msra.mxu0 %v300
        %328 = vmatprep.subr.bf16.mxu0 0
        %329 = vmatpush1.bf16.msra.mxu0 0
        %330 = vmatprep.subr.bf16.mxu0 0
        %331 = vmatpush1.bf16.msra.mxu0 0
        %332 = vmatprep.subr.bf16.mxu0 0
        %333 = vmatpush1.bf16.msra.mxu0 0
        %334 = vmatprep.mubr.bf16.mxu0 %v296
        %335 = vmatmul.mubr.bf16.gmra.mrb[0].mxu0 %v216
        %v336 = vpop.f32.mrb[0].mxu0
        %v337 = vadd.f32 %v208, %v336
        %v338 = vpop.f32.mrb[0].mxu0
        %v339 = vpop.f32.mrb[0].mxu0
        %v340 = vadd.f32 %v208, %v339
        %v341 = vpop.f32.mrb[0].mxu0
        %342 = vdwg.mxu0
        %vm343 = vcmask 261120
        %344 = vst.msk [vmem:[%s166] sm:$0xff] %vm343, %v337
        %345 = vst.msk [vmem:[%s166 + $0x8] sm:$0xff] %vm343, %v340
        %s346 = sand.u32 %s93, 1
        %s347 = scalar_lea.sflag [#allocation3], %s346
        %s348 = sand.u32 %s93, 1
        %s349 = smul.addr %s348, 16
        %s350 = scalar_lea.vmem [#allocation2], %s349
        // Predicated region
        $region33: #{tpu_custom_call.1} parent=31 // pred_check
          %p351 = pneg %p103
        $region34: #{tpu_custom_call.1} parent=31 // pred_check_branch
          %353 = sbr.rel (%p351) target = $region36
        $region35: #{tpu_custom_call.1} parent=31 // pred_region
          %s354 = smul.u32 2, %s17
          %s356 = ssub.s32 256, 256
          %357 = vsyncadd %s347, %s356
          %s358 = smul.addr %s354, 128
          %s359 = scalar_lea.hbm %s3, %s358
          %s360 = sshll.u32 %s350, 4
          %s361 = int_to_ptr.vmem [resolvable:$true] %s360
          %366 = dma.vmem_to_hbm [thread:$0]  %s361, 256, %s359, %s347, 128, 128, 8
        $region36: #{tpu_custom_call.1} parent=31 // pred_fallthru
          _
      $region32: #{tpu_custom_call.1} parent=5 // pred_fallthru
        _
      %p367 = scmp.le.s32.totalorder 2, %s12
      // Predicated region
      $region37: #{tpu_custom_call.1} parent=5 // pred_check
        %p368 = pneg %p367
      $region38: #{tpu_custom_call.1} parent=5 // pred_check_branch
        %370 = sbr.rel (%p368) target = $region40
      $region39: #{tpu_custom_call.1} parent=5 // pred_region
        %s371 = ssub.s32 %s12, 2
        // Predicated region
        $region41: #{tpu_custom_call.1} parent=39 // pred_check
          %p372 = pneg %p109
        $region42: #{tpu_custom_call.1} parent=39 // pred_check_branch
          %374 = sbr.rel (%p372) target = $region44
        $region43: #{tpu_custom_call.1} parent=39 // pred_region
          %s375 = sand.u32 %s94, 1
          %s376 = scalar_lea.sflag [#allocation3], %s375
          %s377 = sand.u32 %s94, 1
          %s378 = smul.addr %s377, 16
          %s379 = scalar_lea.vmem [#allocation2], %s378
          %380 = dma.done %s376, 256
        $region44: #{tpu_custom_call.1} parent=39 // pred_fallthru
          _
      $region40: #{tpu_custom_call.1} parent=5 // pred_fallthru
        _
    $region6: #{tpu_custom_call.1} parent=1 // loop_footer
      %s16 = sadd.s32 1, %s12
    $region7: #{tpu_custom_call.1} parent=1 // loop_footer_branch
      %11 = sbr.rel target = $region3
    $region8: #{tpu_custom_call.1} parent=1 // loop_exit
      _
    %381 = vsyncpa [#allocation3], 1
    %s382 = scalar_lea.sflag [#allocation3], 1
    %383 = vsyncpa %s382, 1

</llo_original>
